<compile_context>
chip_gen: v7x
topology: tpu7x:2x2x1
jax: 0.10.0
libtpu: 0.0.40
codegen_flags: <defaults>
</compile_context>

<pallas_src>
import functools

import jax
import jax.numpy as jnp
from jax.experimental import pallas as pl
from jax.experimental.pallas import tpu as pltpu

HIDDEN = 128     # hidden width of the PGN (matches nn.Linear(input_size, 128))
LANE = 128       # TPU lane width
SUBLANE = 16     # bf16 sublane packing (row tiles kept multiples of this)


def _round_up(x, m):
    return (x + m - 1) // m * m


def pgn_kernel(x_ref, w1_ref, b1_ref, w2_ref, b2_ref, out_ref):
    # Fused Linear -> ReLU -> Linear; everything for this row tile is in VMEM.
    x = x_ref[...]                                          # [tm, D_PAD] bf16
    h = jnp.dot(x, w1_ref[...],
                preferred_element_type=jnp.float32)         # MXU, f32 accum
    h = jnp.maximum(h + b1_ref[...], 0.0)                   # bias + ReLU (VPU, f32)
    o = jnp.dot(h.astype(w2_ref.dtype), w2_ref[...],
                preferred_element_type=jnp.float32)         # MXU, f32 accum
    out_ref[...] = (o + b2_ref[...]).astype(out_ref.dtype)  # [tm, A_PAD] f32


def prepare_params(w1, b1, w2, b2, *, compute_dtype=jnp.bfloat16):
    """One-time padding/casting of the weights to lane-dense, MXU-native form.

    w1: [d_in, 128] -> [round_up(d_in,128), 128]  (compute_dtype)
    w2: [128, n_actions] -> [128, round_up(n_actions,128)]  (compute_dtype)
    biases stay float32 (added after the f32-accumulated matmuls).
    """
    d_in, hidden = w1.shape
    n_actions = w2.shape[1]
    d_pad = _round_up(d_in, LANE)
    a_pad = _round_up(n_actions, LANE)

    w1_p = jnp.zeros((d_pad, hidden), compute_dtype).at[:d_in, :].set(
        w1.astype(compute_dtype))
    w2_p = jnp.zeros((hidden, a_pad), compute_dtype).at[:, :n_actions].set(
        w2.astype(compute_dtype))
    b1_p = jnp.asarray(b1, jnp.float32).reshape(1, hidden)
    b2_p = jnp.zeros((1, a_pad), jnp.float32).at[:, :n_actions].set(
        jnp.asarray(b2, jnp.float32).reshape(1, n_actions))
    return w1_p, b1_p, w2_p, b2_p


def pgn_forward(x, w1_p, b1_p, w2_p, b2_p, *, n_actions, block_rows=256,
                compute_dtype=jnp.bfloat16):
    """Forward pass. x: [B, d_in] float32. Returns [B, n_actions] float32."""
    B, d_in = x.shape
    d_pad, hidden = w1_p.shape
    a_pad = w2_p.shape[1]

    # Row tile: up to 256 (keeps the 256-wide MXU of v6e/v7x fed and amortizes
    # per-grid-step overhead), but no larger than the sublane-rounded batch.
    tm = min(block_rows, _round_up(B, SUBLANE))
    b_pad = _round_up(B, tm)

    # Pad x to lane-dense [b_pad, d_pad] and cast the matmul operand.
    x_p = jnp.zeros((b_pad, d_pad), compute_dtype)
    x_p = x_p.at[:B, :d_in].set(x.astype(compute_dtype))

    grid = (b_pad // tm,)
    itemsz = lambda a: a.size * a.dtype.itemsize
    flops = 2 * b_pad * (d_pad * hidden + hidden * a_pad)
    bytes_accessed = (itemsz(x_p) + itemsz(w1_p) + itemsz(w2_p)
                      + itemsz(b1_p) + itemsz(b2_p) + b_pad * a_pad * 4)

    out_p = pl.pallas_call(
        pgn_kernel,
        out_shape=jax.ShapeDtypeStruct((b_pad, a_pad), jnp.float32),
        grid=grid,
        in_specs=[
            pl.BlockSpec((tm, d_pad), lambda i: (i, 0)),      # x: streamed row tiles
            pl.BlockSpec((d_pad, hidden), lambda i: (0, 0)),  # w1: VMEM-resident
            pl.BlockSpec((1, hidden), lambda i: (0, 0)),      # b1: VMEM-resident
            pl.BlockSpec((hidden, a_pad), lambda i: (0, 0)),  # w2: VMEM-resident
            pl.BlockSpec((1, a_pad), lambda i: (0, 0)),       # b2: VMEM-resident
        ],
        out_specs=pl.BlockSpec((tm, a_pad), lambda i: (i, 0)),
        compiler_params=pltpu.CompilerParams(
            dimension_semantics=("parallel",)),               # megacore split on v7x
        cost_estimate=pl.CostEstimate(
            flops=flops, transcendentals=0, bytes_accessed=bytes_accessed),
    )(x_p, w1_p, b1_p, w2_p, b2_p)

    return out_p[:B, :n_actions]


def init_params(key, input_size, n_actions, hidden=HIDDEN):
    # Deterministic synthetic init (mimics nn.Linear's uniform(-1/sqrt(fan_in), ...)).
    k1, k2, k3, k4 = jax.random.split(key, 4)
    lim1 = 1.0 / jnp.sqrt(jnp.float32(input_size))
    lim2 = 1.0 / jnp.sqrt(jnp.float32(hidden))
    w1 = jax.random.uniform(k1, (input_size, hidden), jnp.float32, -lim1, lim1)
    b1 = jax.random.uniform(k2, (1, hidden), jnp.float32, -lim1, lim1)
    w2 = jax.random.uniform(k3, (hidden, n_actions), jnp.float32, -lim2, lim2)
    b2 = jax.random.uniform(k4, (1, n_actions), jnp.float32, -lim2, lim2)
    return w1, b1, w2, b2


if __name__ == "__main__":
    key = jax.random.PRNGKey(0)
    kx, kp = jax.random.split(key)

    # Batched rollout-style call: B >= 256 amortizes launch + weight DMA and
    # exercises the row-tile grid (two tiles of 256 here).
    batch = 512
    input_size = 32
    n_actions = 8

    x = jax.random.normal(kx, (batch, input_size), jnp.float32)
    w1, b1, w2, b2 = init_params(kp, input_size, n_actions)

    # Pad / cast the weights once, outside the hot path.
    w1_p, b1_p, w2_p, b2_p = prepare_params(w1, b1, w2, b2)

    fwd = jax.jit(functools.partial(pgn_forward, n_actions=n_actions,
                                    block_rows=256))
    out = fwd(x, w1_p, b1_p, w2_p, b2_p)
    out = jax.block_until_ready(out)
    assert out.shape == (batch, n_actions)

    # Reference with the same bf16-operand / f32-accumulation dtype flow.
    xb = x.astype(jnp.bfloat16)
    w1b = w1.astype(jnp.bfloat16)
    w2b = w2.astype(jnp.bfloat16)
    h_ref = jnp.maximum(
        jnp.dot(xb, w1b, preferred_element_type=jnp.float32) + b1, 0.0)
    ref_bf16 = jnp.dot(h_ref.astype(jnp.bfloat16), w2b,
                       preferred_element_type=jnp.float32) + b2
    assert jnp.allclose(out, ref_bf16, atol=2e-3, rtol=2e-3), (
        float(jnp.max(jnp.abs(out - ref_bf16))))

    # Sanity check against the original full-f32 module semantics.
    ref_f32 = jnp.maximum(x @ w1 + b1, 0.0) @ w2 + b2
    assert jnp.allclose(out, ref_f32, atol=5e-2, rtol=5e-2), (
        float(jnp.max(jnp.abs(out - ref_f32))))

    print("KERNEL_OK")
</pallas_src>

<mosaic_0001>
module attributes {stable_mosaic.version = 11 : i64} {
  func.func @pgn_kernel(%arg0: i32, %arg1: memref<256x128xbf16, #tpu.memory_space<vmem>>, %arg2: memref<128x128xbf16, #tpu.memory_space<vmem>>, %arg3: memref<1x128xf32, #tpu.memory_space<vmem>>, %arg4: memref<128x128xbf16, #tpu.memory_space<vmem>>, %arg5: memref<1x128xf32, #tpu.memory_space<vmem>>, %arg6: memref<256x128xf32, #tpu.memory_space<vmem>>) attributes {dimension_semantics = [#tpu.dimension_semantics<parallel>], iteration_bounds = array<i64: 2>, scalar_prefetch = 0 : i64, scratch_operands = 0 : i64, tpu.core_type = #tpu.core_type<tc>, window_params = [{transform_indices = @transform_0, window_bounds = array<i64: 256, 128>}, {pipeline_mode = #tpu.pipeline_mode<synchronous>, transform_indices = @transform_1, window_bounds = array<i64: 128, 128>}, {pipeline_mode = #tpu.pipeline_mode<synchronous>, transform_indices = @transform_2, window_bounds = array<i64: 1, 128>}, {pipeline_mode = #tpu.pipeline_mode<synchronous>, transform_indices = @transform_3, window_bounds = array<i64: 128, 128>}, {pipeline_mode = #tpu.pipeline_mode<synchronous>, transform_indices = @transform_4, window_bounds = array<i64: 1, 128>}, {transform_indices = @transform_5, window_bounds = array<i64: 256, 128>}]} {
    %c0 = arith.constant 0 : index
    %c0_0 = arith.constant 0 : index
    %0 = vector.load %arg1[%c0, %c0_0] : memref<256x128xbf16, #tpu.memory_space<vmem>>, vector<256x128xbf16>
    %c0_1 = arith.constant 0 : index
    %c0_2 = arith.constant 0 : index
    %1 = vector.load %arg2[%c0_1, %c0_2] : memref<128x128xbf16, #tpu.memory_space<vmem>>, vector<128x128xbf16>
    %cst = arith.constant dense<0.000000e+00> : vector<256x128xf32>
    %2 = tpu.matmul %0, %1, %cst {dimension_numbers = #tpu.dot_dimension_numbers<[1], [0], [0], [1], [0, 0, 1, 1], [], []>} : vector<256x128xbf16>, vector<128x128xbf16>, vector<256x128xf32> -> vector<256x128xf32>
    %c0_3 = arith.constant 0 : index
    %c0_4 = arith.constant 0 : index
    %3 = vector.load %arg3[%c0_3, %c0_4] : memref<1x128xf32, #tpu.memory_space<vmem>>, vector<1x128xf32>
    %4 = vector.broadcast %3 : vector<1x128xf32> to vector<256x128xf32>
    %5 = arith.addf %2, %4 : vector<256x128xf32>
    %cst_5 = arith.constant 0.000000e+00 : f32
    %6 = vector.broadcast %cst_5 : f32 to vector<256x128xf32>
    %7 = arith.maximumf %5, %6 : vector<256x128xf32>
    %8 = arith.truncf %7 : vector<256x128xf32> to vector<256x128xbf16>
    %c0_6 = arith.constant 0 : index
    %c0_7 = arith.constant 0 : index
    %9 = vector.load %arg4[%c0_6, %c0_7] : memref<128x128xbf16, #tpu.memory_space<vmem>>, vector<128x128xbf16>
    %cst_8 = arith.constant dense<0.000000e+00> : vector<256x128xf32>
    %10 = tpu.matmul %8, %9, %cst_8 {dimension_numbers = #tpu.dot_dimension_numbers<[1], [0], [0], [1], [0, 0, 1, 1], [], []>} : vector<256x128xbf16>, vector<128x128xbf16>, vector<256x128xf32> -> vector<256x128xf32>
    %c0_9 = arith.constant 0 : index
    %c0_10 = arith.constant 0 : index
    %11 = vector.load %arg5[%c0_9, %c0_10] : memref<1x128xf32, #tpu.memory_space<vmem>>, vector<1x128xf32>
    %12 = vector.broadcast %11 : vector<1x128xf32> to vector<256x128xf32>
    %13 = arith.addf %10, %12 : vector<256x128xf32>
    %c0_11 = arith.constant 0 : index
    %c0_12 = arith.constant 0 : index
    %14 = vector.load %arg6[%c0_11, %c0_12] : memref<256x128xf32, #tpu.memory_space<vmem>>, vector<256x128xf32>
    tpu.vector_store %arg6[%c0_11, %c0_12], %13 {strides = array<i32>} : memref<256x128xf32, #tpu.memory_space<vmem>>, vector<256x128xf32>,
    return
  }
  func.func @transform_0(%arg0: i32) -> (i32, i32) {
    %c0_i32 = arith.constant 0 : i32
    %c0_i32_0 = arith.constant 0 : i32
    return %arg0, %c0_i32 : i32, i32
  }
  func.func @transform_1(%arg0: i32) -> (i32, i32) {
    %c0_i32 = arith.constant 0 : i32
    %c0_i32_0 = arith.constant 0 : i32
    %c0_i32_1 = arith.constant 0 : i32
    return %c0_i32, %c0_i32_0 : i32, i32
  }
  func.func @transform_2(%arg0: i32) -> (i32, i32) {
    %c0_i32 = arith.constant 0 : i32
    %c0_i32_0 = arith.constant 0 : i32
    %c0_i32_1 = arith.constant 0 : i32
    return %c0_i32, %c0_i32_0 : i32, i32
  }
  func.func @transform_3(%arg0: i32) -> (i32, i32) {
    %c0_i32 = arith.constant 0 : i32
    %c0_i32_0 = arith.constant 0 : i32
    %c0_i32_1 = arith.constant 0 : i32
    return %c0_i32, %c0_i32_0 : i32, i32
  }
  func.func @transform_4(%arg0: i32) -> (i32, i32) {
    %c0_i32 = arith.constant 0 : i32
    %c0_i32_0 = arith.constant 0 : i32
    %c0_i32_1 = arith.constant 0 : i32
    return %c0_i32, %c0_i32_0 : i32, i32
  }
  func.func @transform_5(%arg0: i32) -> (i32, i32) {
    %c0_i32 = arith.constant 0 : i32
    %c0_i32_0 = arith.constant 0 : i32
    return %arg0, %c0_i32 : i32, i32
  }
}

</mosaic_0001>

<llo_original>
// kernel: pgn_forward.1
$region0: #{pgn_forward.1}
  #allocation0 [shape = 'u32[]', space=smem, size = 0x4, offset = 0x4, fixed_abs, tag = 'smem constant byte address 0x4 - core index']
  #allocation1 [shape = 'u32[144,128]{1,0:T(1,128)}', space=vmem, size = 0x12000, scoped, tag = 'internal scratch']
  %s0 = inlined_call_operand.vmem [shape: bf16[512,128], index: 0, kind: input, shape index: {}]
  %s1 = inlined_call_operand.vmem [shape: bf16[128,128], index: 1, kind: input, shape index: {}]
  %s2 = inlined_call_operand.vmem [shape: f32[1,128], index: 2, kind: input, shape index: {}]
  %s3 = inlined_call_operand.vmem [shape: bf16[128,128], index: 3, kind: input, shape index: {}]
  %s4 = inlined_call_operand.vmem [shape: f32[1,128], index: 4, kind: input, shape index: {}]
  %s5 = inlined_call_operand.vmem [shape: f32[512,128], index: 5, kind: output, shape index: {}]
  %s6 = sld [smem:[#allocation0]]
  $region53: #{pgn_forward.1} parent=0
    _
  %s8 = ssub.s32 1, %s6
  %s9 = scalar_select 0, %s8, %s6
  loop: start=0, step=1, limit=4
  $region2: #{pgn_forward.1} parent=0 // loop_pre_header
    _
  $region3: #{pgn_forward.1} parent=0 // loop_header
    %s11 = sphi 0, %s15
    %p12 = scmp.ge.s32.totalorder %s11, 4
    %s21 = sphi 0, %s23
    %s24 = sphi 0, %s21
    %s25 = sphi 0, %s24
    %s41 = sphi 0, %s25
    %s45 = sphi 0, %s45
    %s47 = sphi 0, %s45
    %s48 = sphi 0, %s47
    %s62 = sphi 0, %s48
    %s66 = sphi 0, %s66
    %s68 = sphi 0, %s66
    %s69 = sphi 0, %s68
    %s83 = sphi 0, %s69
    %s87 = sphi 0, %s87
    %s89 = sphi 0, %s87
    %s90 = sphi 0, %s89
    %s104 = sphi 0, %s90
    %s108 = sphi 0, %s108
    %s110 = sphi 0, %s108
    %s111 = sphi 0, %s110
    %s125 = sphi 0, %s111
    %s131 = sphi 0, %s133
    %s134 = sphi 0, %s131
    %s135 = sphi 0, %s134
    %s151 = sphi 0, %s135
  $region4: #{pgn_forward.1} parent=0 // loop_header_branch
    %14 = sbr.rel (%p12) target = $region8
  $region5: #{pgn_forward.1} parent=0 // loop_body
    %s16 = ssub.s32 %s11, 1
    %s17 = ssub.s32 %s11, 2
    %s18 = sadd.s32 %s11, 1
    %s19 = ssub.s32 %s11, %s18
    %p20 = scmp.eq.s32.totalorder %s19, 0
    %s22 = sadd.s32 %s21, 1
    %s23 = scalar_select %p20, %s21, %s22
    %p26 = pneg %p20
    %p27 = scmp.eq.s32.totalorder %s11, 1
    %p28 = por %p26, %p27
    %p29 = scmp.ne.s32.totalorder %s21, %s24
    %p30 = scmp.eq.s32.totalorder %s11, 0
    %p31 = por %p29, %p30
    %p32 = scmp.ne.s32.totalorder %s21, %s24
    %p33 = scmp.eq.s32.totalorder %s16, 1
    %p34 = por %p32, %p33
    %p35 = scmp.ne.s32.totalorder %s24, %s25
    %p36 = scmp.eq.s32.totalorder %s16, 0
    %p37 = por %p35, %p36
    %p38 = scmp.ne.s32.totalorder %s24, %s25
    %p39 = scmp.eq.s32.totalorder %s17, 1
    %p40 = por %p38, %p39
    %p42 = scmp.ne.s32.totalorder %s25, %s41
    %p43 = scmp.eq.s32.totalorder %s17, 0
    %p44 = por %p42, %p43
    %s46 = sadd.s32 %s45, 1
    %p49 = scmp.eq.s32.totalorder %s11, 1
    %p50 = scmp.ne.s32.totalorder %s45, %s47
    %p51 = scmp.eq.s32.totalorder %s11, 0
    %p52 = por %p50, %p51
    %p53 = scmp.ne.s32.totalorder %s45, %s47
    %p54 = scmp.eq.s32.totalorder %s16, 1
    %p55 = por %p53, %p54
    %p56 = scmp.ne.s32.totalorder %s47, %s48
    %p57 = scmp.eq.s32.totalorder %s16, 0
    %p58 = por %p56, %p57
    %p59 = scmp.ne.s32.totalorder %s47, %s48
    %p60 = scmp.eq.s32.totalorder %s17, 1
    %p61 = por %p59, %p60
    %p63 = scmp.ne.s32.totalorder %s48, %s62
    %p64 = scmp.eq.s32.totalorder %s17, 0
    %p65 = por %p63, %p64
    %s67 = sadd.s32 %s66, 1
    %p70 = scmp.eq.s32.totalorder %s11, 1
    %p71 = scmp.ne.s32.totalorder %s66, %s68
    %p72 = scmp.eq.s32.totalorder %s11, 0
    %p73 = por %p71, %p72
    %p74 = scmp.ne.s32.totalorder %s66, %s68
    %p75 = scmp.eq.s32.totalorder %s16, 1
    %p76 = por %p74, %p75
    %p77 = scmp.ne.s32.totalorder %s68, %s69
    %p78 = scmp.eq.s32.totalorder %s16, 0
    %p79 = por %p77, %p78
    %p80 = scmp.ne.s32.totalorder %s68, %s69
    %p81 = scmp.eq.s32.totalorder %s17, 1
    %p82 = por %p80, %p81
    %p84 = scmp.ne.s32.totalorder %s69, %s83
    %p85 = scmp.eq.s32.totalorder %s17, 0
    %p86 = por %p84, %p85
    %s88 = sadd.s32 %s87, 1
    %p91 = scmp.eq.s32.totalorder %s11, 1
    %p92 = scmp.ne.s32.totalorder %s87, %s89
    %p93 = scmp.eq.s32.totalorder %s11, 0
    %p94 = por %p92, %p93
    %p95 = scmp.ne.s32.totalorder %s87, %s89
    %p96 = scmp.eq.s32.totalorder %s16, 1
    %p97 = por %p95, %p96
    %p98 = scmp.ne.s32.totalorder %s89, %s90
    %p99 = scmp.eq.s32.totalorder %s16, 0
    %p100 = por %p98, %p99
    %p101 = scmp.ne.s32.totalorder %s89, %s90
    %p102 = scmp.eq.s32.totalorder %s17, 1
    %p103 = por %p101, %p102
    %p105 = scmp.ne.s32.totalorder %s90, %s104
    %p106 = scmp.eq.s32.totalorder %s17, 0
    %p107 = por %p105, %p106
    %s109 = sadd.s32 %s108, 1
    %p112 = scmp.eq.s32.totalorder %s11, 1
    %p113 = scmp.ne.s32.totalorder %s108, %s110
    %p114 = scmp.eq.s32.totalorder %s11, 0
    %p115 = por %p113, %p114
    %p116 = scmp.ne.s32.totalorder %s108, %s110
    %p117 = scmp.eq.s32.totalorder %s16, 1
    %p118 = por %p116, %p117
    %p119 = scmp.ne.s32.totalorder %s110, %s111
    %p120 = scmp.eq.s32.totalorder %s16, 0
    %p121 = por %p119, %p120
    %p122 = scmp.ne.s32.totalorder %s110, %s111
    %p123 = scmp.eq.s32.totalorder %s17, 1
    %p124 = por %p122, %p123
    %p126 = scmp.ne.s32.totalorder %s111, %s125
    %p127 = scmp.eq.s32.totalorder %s17, 0
    %p128 = por %p126, %p127
    %s129 = ssub.s32 %s11, %s18
    %p130 = scmp.eq.s32.totalorder %s129, 0
    %s132 = sadd.s32 %s131, 1
    %s133 = scalar_select %p130, %s131, %s132
    %p136 = pneg %p130
    %p137 = scmp.eq.s32.totalorder %s11, 1
    %p138 = por %p136, %p137
    %p139 = scmp.ne.s32.totalorder %s131, %s134
    %p140 = scmp.eq.s32.totalorder %s11, 0
    %p141 = por %p139, %p140
    %p142 = scmp.ne.s32.totalorder %s131, %s134
    %p143 = scmp.eq.s32.totalorder %s16, 1
    %p144 = por %p142, %p143
    %p145 = scmp.ne.s32.totalorder %s134, %s135
    %p146 = scmp.eq.s32.totalorder %s16, 0
    %p147 = por %p145, %p146
    %p148 = scmp.ne.s32.totalorder %s134, %s135
    %p149 = scmp.eq.s32.totalorder %s17, 1
    %p150 = por %p148, %p149
    %p152 = scmp.ne.s32.totalorder %s135, %s151
    %p153 = scmp.eq.s32.totalorder %s17, 0
    %p154 = por %p152, %p153
    %p155 = scmp.le.s32.totalorder 1, %s11
    %p156 = scmp.lt.s32.totalorder %s11, 3
    %p157 = pnand %p155, %p156
    %p158 = pneg %p157
    // Predicated region
    $region9: #{pgn_forward.1} parent=5 // pred_check
      _
    $region10: #{pgn_forward.1} parent=5 // pred_check_branch
      %160 = sbr.rel (%p157) target = $region12
    $region11: #{pgn_forward.1} parent=5 // pred_region
      %s161 = ssub.s32 %s11, 1
      // Predicated region
      $region13: #{pgn_forward.1} parent=11 // pred_check
        %p162 = pneg %p58
      $region14: #{pgn_forward.1} parent=11 // pred_check_branch
        %164 = sbr.rel (%p162) target = $region16
      $region15: #{pgn_forward.1} parent=11 // pred_region
        _
      $region16: #{pgn_forward.1} parent=11 // pred_fallthru
        _
      // Predicated region
      $region17: #{pgn_forward.1} parent=11 // pred_check
        %p165 = pneg %p79
      $region18: #{pgn_forward.1} parent=11 // pred_check_branch
        %167 = sbr.rel (%p165) target = $region20
      $region19: #{pgn_forward.1} parent=11 // pred_region
        _
      $region20: #{pgn_forward.1} parent=11 // pred_fallthru
        _
      // Predicated region
      $region21: #{pgn_forward.1} parent=11 // pred_check
        %p168 = pneg %p100
      $region22: #{pgn_forward.1} parent=11 // pred_check_branch
        %170 = sbr.rel (%p168) target = $region24
      $region23: #{pgn_forward.1} parent=11 // pred_region
        _
      $region24: #{pgn_forward.1} parent=11 // pred_fallthru
        _
      // Predicated region
      $region25: #{pgn_forward.1} parent=11 // pred_check
        %p171 = pneg %p121
      $region26: #{pgn_forward.1} parent=11 // pred_check_branch
        %173 = sbr.rel (%p171) target = $region28
      $region27: #{pgn_forward.1} parent=11 // pred_region
        _
      $region28: #{pgn_forward.1} parent=11 // pred_fallthru
        _
    $region12: #{pgn_forward.1} parent=5 // pred_fallthru
      _
    %p174 = scmp.lt.s32.totalorder %s11, 2
    // Predicated region
    $region29: #{pgn_forward.1} parent=5 // pred_check
      %p175 = pneg %p174
    $region30: #{pgn_forward.1} parent=5 // pred_check_branch
      %177 = sbr.rel (%p175) target = $region32
    $region31: #{pgn_forward.1} parent=5 // pred_region
      // Predicated region
      $region33: #{pgn_forward.1} parent=31 // pred_check
        %p178 = pneg %p31
      $region34: #{pgn_forward.1} parent=31 // pred_check_branch
        %180 = sbr.rel (%p178) target = $region36
      $region35: #{pgn_forward.1} parent=31 // pred_region
        %s181 = smul.u32 32, %s11
        %p182 = scmp.lt.s32.totalorder %s181, 63
        %s183 = scalar_select %p182, %s181, 63
        %s184 = smul.addr %s183, 4
        %s185 = scalar_lea.vmem %s0, %s184
        %s186 = smul.u32 32, %s11
      $region36: #{pgn_forward.1} parent=31 // pred_fallthru
        _
    $region32: #{pgn_forward.1} parent=5 // pred_fallthru
      _
    %p187 = scmp.le.s32.totalorder 1, %s11
    %p188 = scmp.lt.s32.totalorder %s11, 3
    %p189 = pnand %p187, %p188
    %p190 = pneg %p189
    // Predicated region
    $region37: #{pgn_forward.1} parent=5 // pred_check
      _
    $region38: #{pgn_forward.1} parent=5 // pred_check_branch
      %192 = sbr.rel (%p189) target = $region40
    $region39: #{pgn_forward.1} parent=5 // pred_region
      %s193 = ssub.s32 %s11, 1
      %s194 = smul.u32 32, %s16
      %p195 = scmp.lt.s32.totalorder %s194, 63
      %s196 = scalar_select %p195, %s194, 63
      %s197 = smul.addr %s196, 4
      %s198 = scalar_lea.vmem %s0, %s197
      %p199 = pneg %p37
      %p200 = pneg %p34
      %p201 = pneg %p58
      %p202 = pneg %p55
      %p203 = pneg %p79
      %p204 = pneg %p76
      %p205 = pneg %p100
      %p206 = pneg %p97
      %p207 = pneg %p121
      %p208 = pneg %p118
      %p209 = pneg %p147
      %p210 = pneg %p144
      %s211 = smul.u32 32, %s16
      %p212 = scmp.lt.s32.totalorder %s211, 63
      %s213 = scalar_select %p212, %s211, 63
      %s214 = smul.addr %s213, 8
      %s215 = scalar_lea.vmem %s5, %s214
      %s216 = smul.u32 32, %s16
      %p217 = scmp.lt.s32.totalorder %s216, 63
      %s218 = scalar_select %p217, %s216, 63
      %s219 = smul.addr %s218, 4
      %s220 = scalar_lea.vmem %s0, %s219
      %s221 = smul.u32 32, %s16
      %s222 = smul.u32 32, %s16
      %p223 = scmp.lt.s32.totalorder %s222, 63
      %s224 = scalar_select %p223, %s222, 63
      %s225 = smul.addr %s224, 8
      %s226 = scalar_lea.vmem %s5, %s225
      %s227 = smul.u32 32, %s16
      %v229 = vld [vmem:[%s220] sm:$0xf]
      %v230 = vld [vmem:[%s220 + $0x4] sm:$0xf]
      %v231 = vld [vmem:[%s220 + $0x8] sm:$0xf]
      %v232 = vld [vmem:[%s220 + $0xc] sm:$0xf]
      %v233 = vld [vmem:[%s220 + $0x10] sm:$0xf]
      %v234 = vld [vmem:[%s220 + $0x14] sm:$0xf]
      %v235 = vld [vmem:[%s220 + $0x18] sm:$0xf]
      %v236 = vld [vmem:[%s220 + $0x1c] sm:$0xf]
      %v237 = vld [vmem:[%s220 + $0x20] sm:$0xf]
      %v238 = vld [vmem:[%s220 + $0x24] sm:$0xf]
      %v239 = vld [vmem:[%s220 + $0x28] sm:$0xf]
      %v240 = vld [vmem:[%s220 + $0x2c] sm:$0xf]
      %v241 = vld [vmem:[%s220 + $0x30] sm:$0xf]
      %v242 = vld [vmem:[%s220 + $0x34] sm:$0xf]
      %v243 = vld [vmem:[%s220 + $0x38] sm:$0xf]
      %v244 = vld [vmem:[%s220 + $0x3c] sm:$0xf]
      %v245 = vld [vmem:[%s220 + $0x40] sm:$0xf]
      %v246 = vld [vmem:[%s220 + $0x44] sm:$0xf]
      %v247 = vld [vmem:[%s220 + $0x48] sm:$0xf]
      %v248 = vld [vmem:[%s220 + $0x4c] sm:$0xf]
      %v249 = vld [vmem:[%s220 + $0x50] sm:$0xf]
      %v250 = vld [vmem:[%s220 + $0x54] sm:$0xf]
      %v251 = vld [vmem:[%s220 + $0x58] sm:$0xf]
      %v252 = vld [vmem:[%s220 + $0x5c] sm:$0xf]
      %v253 = vld [vmem:[%s220 + $0x60] sm:$0xf]
      %v254 = vld [vmem:[%s220 + $0x64] sm:$0xf]
      %v255 = vld [vmem:[%s220 + $0x68] sm:$0xf]
      %v256 = vld [vmem:[%s220 + $0x6c] sm:$0xf]
      %v257 = vld [vmem:[%s220 + $0x70] sm:$0xf]
      %v258 = vld [vmem:[%s220 + $0x74] sm:$0xf]
      %v259 = vld [vmem:[%s220 + $0x78] sm:$0xf]
      %v260 = vld [vmem:[%s220 + $0x7c] sm:$0xf]
      %v261 = vld [vmem:[%s1] sm:$0xf]
      %v262 = vld [vmem:[%s1 + $0x4] sm:$0xf]
      %v263 = vld [vmem:[%s1 + $0x8] sm:$0xf]
      %v264 = vld [vmem:[%s1 + $0xc] sm:$0xf]
      %v265 = vld [vmem:[%s1 + $0x10] sm:$0xf]
      %v266 = vld [vmem:[%s1 + $0x14] sm:$0xf]
      %v267 = vld [vmem:[%s1 + $0x18] sm:$0xf]
      %v268 = vld [vmem:[%s1 + $0x1c] sm:$0xf]
      %v269 = vld [vmem:[%s1 + $0x20] sm:$0xf]
      %v270 = vld [vmem:[%s1 + $0x24] sm:$0xf]
      %v271 = vld [vmem:[%s1 + $0x28] sm:$0xf]
      %v272 = vld [vmem:[%s1 + $0x2c] sm:$0xf]
      %v273 = vld [vmem:[%s1 + $0x30] sm:$0xf]
      %v274 = vld [vmem:[%s1 + $0x34] sm:$0xf]
      %v275 = vld [vmem:[%s1 + $0x38] sm:$0xf]
      %v276 = vld [vmem:[%s1 + $0x3c] sm:$0xf]
      %v277 = vld [vmem:[%s2] sm:$0x1]
      %v279 = vlaneseq
      %v280 = vshrl.u32 %v279, 7
      %v281 = vsub.s32 0, %v280
      %v282 = vrot.slane %v277, %v281
      %v316 = vunpack.c.l.b16 %v229
      %v317 = vunpack.c.l.b16 %v230
      %v318 = vunpack.c.l.b16 %v231
      %v319 = vunpack.c.l.b16 %v232
      %v320 = vunpack.c.l.b16 %v233
      %v321 = vunpack.c.l.b16 %v234
      %v322 = vunpack.c.l.b16 %v235
      %v323 = vunpack.c.l.b16 %v236
      %v324 = vunpack.c.l.b16 %v237
      %v325 = vunpack.c.l.b16 %v238
      %v326 = vunpack.c.l.b16 %v239
      %v327 = vunpack.c.l.b16 %v240
      %v328 = vunpack.c.l.b16 %v241
      %v329 = vunpack.c.l.b16 %v242
      %v330 = vunpack.c.l.b16 %v243
      %v331 = vunpack.c.l.b16 %v244
      %v332 = vunpack.c.l.b16 %v245
      %v333 = vunpack.c.l.b16 %v246
      %v334 = vunpack.c.l.b16 %v247
      %v335 = vunpack.c.l.b16 %v248
      %v336 = vunpack.c.l.b16 %v249
      %v337 = vunpack.c.l.b16 %v250
      %v338 = vunpack.c.l.b16 %v251
      %v339 = vunpack.c.l.b16 %v252
      %v340 = vunpack.c.l.b16 %v253
      %v341 = vunpack.c.l.b16 %v254
      %v342 = vunpack.c.l.b16 %v255
      %v343 = vunpack.c.l.b16 %v256
      %v344 = vunpack.c.l.b16 %v257
      %v345 = vunpack.c.l.b16 %v258
      %v346 = vunpack.c.l.b16 %v259
      %v347 = vunpack.c.l.b16 %v260
      %v348 = vpack.c.b16 %v317, %v316
      %v349 = vpack.c.b16 %v319, %v318
      %v350 = vpack.c.b16 %v321, %v320
      %v351 = vpack.c.b16 %v323, %v322
      %v352 = vpack.c.b16 %v325, %v324
      %v353 = vpack.c.b16 %v327, %v326
      %v354 = vpack.c.b16 %v329, %v328
      %v355 = vpack.c.b16 %v331, %v330
      %v356 = vpack.c.b16 %v333, %v332
      %v357 = vpack.c.b16 %v335, %v334
      %v358 = vpack.c.b16 %v337, %v336
      %v359 = vpack.c.b16 %v339, %v338
      %v360 = vpack.c.b16 %v341, %v340
      %v361 = vpack.c.b16 %v343, %v342
      %v362 = vpack.c.b16 %v345, %v344
      %v363 = vpack.c.b16 %v347, %v346
      %v396 = vunpack.c.l.b16 %v261
      %v397 = vunpack.c.l.b16 %v262
      %v398 = vunpack.c.l.b16 %v263
      %v399 = vunpack.c.l.b16 %v264
      %v400 = vunpack.c.l.b16 %v265
      %v401 = vunpack.c.l.b16 %v266
      %v402 = vunpack.c.l.b16 %v267
      %v403 = vunpack.c.l.b16 %v268
      %v404 = vunpack.c.l.b16 %v269
      %v405 = vunpack.c.l.b16 %v270
      %v406 = vunpack.c.l.b16 %v271
      %v407 = vunpack.c.l.b16 %v272
      %v408 = vunpack.c.l.b16 %v273
      %v409 = vunpack.c.l.b16 %v274
      %v410 = vunpack.c.l.b16 %v275
      %v411 = vunpack.c.l.b16 %v276
      %v412 = vpack.c.b16 %v397, %v396
      %v413 = vpack.c.b16 %v399, %v398
      %v414 = vpack.c.b16 %v401, %v400
      %v415 = vpack.c.b16 %v403, %v402
      %v416 = vpack.c.b16 %v405, %v404
      %v417 = vpack.c.b16 %v407, %v406
      %v418 = vpack.c.b16 %v409, %v408
      %v419 = vpack.c.b16 %v411, %v410
      %428 = vmatprep.subr.bf16.mxu0 0
      %429 = vmatpush1.bf16.msra.mxu0 %v412
      %430 = vmatprep.subr.bf16.mxu0 0
      %431 = vmatpush1.bf16.msra.mxu0 %v413
      %432 = vmatprep.subr.bf16.mxu0 0
      %433 = vmatpush1.bf16.msra.mxu0 %v414
      %434 = vmatprep.subr.bf16.mxu0 0
      %435 = vmatpush1.bf16.msra.mxu0 %v415
      %436 = vmatprep.subr.bf16.mxu0 0
      %437 = vmatpush1.bf16.msra.mxu0 %v416
      %438 = vmatprep.subr.bf16.mxu0 0
      %439 = vmatpush1.bf16.msra.mxu0 %v417
      %440 = vmatprep.subr.bf16.mxu0 0
      %441 = vmatpush1.bf16.msra.mxu0 %v418
      %442 = vmatprep.subr.bf16.mxu0 0
      %443 = vmatpush1.bf16.msra.mxu0 %v419
      %444 = vmatprep.subr.bf16.mxu0 0
      %445 = vmatpush1.bf16.msra.mxu0 0
      %446 = vmatprep.subr.bf16.mxu0 0
      %447 = vmatpush1.bf16.msra.mxu0 0
      %448 = vmatprep.subr.bf16.mxu0 0
      %449 = vmatpush1.bf16.msra.mxu0 0
      %450 = vmatprep.subr.bf16.mxu0 0
      %451 = vmatpush1.bf16.msra.mxu0 0
      %452 = vmatprep.subr.bf16.mxu0 0
      %453 = vmatpush1.bf16.msra.mxu0 0
      %454 = vmatprep.subr.bf16.mxu0 0
      %455 = vmatpush1.bf16.msra.mxu0 0
      %456 = vmatprep.subr.bf16.mxu0 0
      %457 = vmatpush1.bf16.msra.mxu0 0
      %458 = vmatprep.subr.bf16.mxu0 0
      %459 = vmatpush1.bf16.msra.mxu0 0
      %460 = vmatprep.mubr.bf16.mxu0 0
      %461 = vmatmul.mubr.bf16.gmra.mrb[0].mxu0 %v348
      %v462 = vpop.f32.mrb[0].mxu0
      %v463 = vadd.f32 %v282, %v462
      %v464 = vpop.f32.mrb[0].mxu0
      %v465 = vpop.f32.mrb[0].mxu0
      %v466 = vadd.f32 %v282, %v465
      %v467 = vpop.f32.mrb[0].mxu0
      %468 = vmatprep.mubr.bf16.mxu0 0
      %469 = vmatmul.mubr.bf16.gmra.mrb[0].mxu0 %v349
      %v470 = vpop.f32.mrb[0].mxu0
      %v471 = vadd.f32 %v282, %v470
      %v472 = vpop.f32.mrb[0].mxu0
      %v473 = vpop.f32.mrb[0].mxu0
      %v474 = vadd.f32 %v282, %v473
      %v475 = vpop.f32.mrb[0].mxu0
      %476 = vmatprep.mubr.bf16.mxu0 0
      %477 = vmatmul.mubr.bf16.gmra.mrb[0].mxu0 %v350
      %v478 = vpop.f32.mrb[0].mxu0
      %v479 = vadd.f32 %v282, %v478
      %v480 = vpop.f32.mrb[0].mxu0
      %v481 = vpop.f32.mrb[0].mxu0
      %v482 = vadd.f32 %v282, %v481
      %v483 = vpop.f32.mrb[0].mxu0
      %484 = vmatprep.mubr.bf16.mxu0 0
      %485 = vmatmul.mubr.bf16.gmra.mrb[0].mxu0 %v351
      %v486 = vpop.f32.mrb[0].mxu0
      %v487 = vadd.f32 %v282, %v486
      %v488 = vpop.f32.mrb[0].mxu0
      %v489 = vpop.f32.mrb[0].mxu0
      %v490 = vadd.f32 %v282, %v489
      %v491 = vpop.f32.mrb[0].mxu0
      %492 = vmatprep.mubr.bf16.mxu0 0
      %493 = vmatmul.mubr.bf16.gmra.mrb[0].mxu0 %v352
      %v494 = vpop.f32.mrb[0].mxu0
      %v495 = vadd.f32 %v282, %v494
      %v496 = vpop.f32.mrb[0].mxu0
      %v497 = vpop.f32.mrb[0].mxu0
      %v498 = vadd.f32 %v282, %v497
      %v499 = vpop.f32.mrb[0].mxu0
      %500 = vmatprep.mubr.bf16.mxu0 0
      %501 = vmatmul.mubr.bf16.gmra.mrb[0].mxu0 %v353
      %v502 = vpop.f32.mrb[0].mxu0
      %v503 = vadd.f32 %v282, %v502
      %v504 = vpop.f32.mrb[0].mxu0
      %v505 = vpop.f32.mrb[0].mxu0
      %v506 = vadd.f32 %v282, %v505
      %v507 = vpop.f32.mrb[0].mxu0
      %508 = vmatprep.mubr.bf16.mxu0 0
      %509 = vmatmul.mubr.bf16.gmra.mrb[0].mxu0 %v354
      %v510 = vpop.f32.mrb[0].mxu0
      %v511 = vadd.f32 %v282, %v510
      %v512 = vpop.f32.mrb[0].mxu0
      %v513 = vpop.f32.mrb[0].mxu0
      %v514 = vadd.f32 %v282, %v513
      %v515 = vpop.f32.mrb[0].mxu0
      %516 = vmatprep.mubr.bf16.mxu0 0
      %517 = vmatmul.mubr.bf16.gmra.mrb[0].mxu0 %v355
      %v518 = vpop.f32.mrb[0].mxu0
      %v519 = vadd.f32 %v282, %v518
      %v520 = vpop.f32.mrb[0].mxu0
      %v521 = vpop.f32.mrb[0].mxu0
      %v522 = vadd.f32 %v282, %v521
      %v523 = vpop.f32.mrb[0].mxu0
      %524 = vmatprep.mubr.bf16.mxu0 0
      %525 = vmatmul.mubr.bf16.gmra.mrb[0].mxu0 %v356
      %v526 = vpop.f32.mrb[0].mxu0
      %v527 = vadd.f32 %v282, %v526
      %v528 = vpop.f32.mrb[0].mxu0
      %v529 = vpop.f32.mrb[0].mxu0
      %v530 = vadd.f32 %v282, %v529
      %v531 = vpop.f32.mrb[0].mxu0
      %532 = vmatprep.mubr.bf16.mxu0 0
      %533 = vmatmul.mubr.bf16.gmra.mrb[0].mxu0 %v357
      %v534 = vpop.f32.mrb[0].mxu0
      %v535 = vadd.f32 %v282, %v534
      %v536 = vpop.f32.mrb[0].mxu0
      %v537 = vpop.f32.mrb[0].mxu0
      %v538 = vadd.f32 %v282, %v537
      %v539 = vpop.f32.mrb[0].mxu0
      %540 = vmatprep.mubr.bf16.mxu0 0
      %541 = vmatmul.mubr.bf16.gmra.mrb[0].mxu0 %v358
      %v542 = vpop.f32.mrb[0].mxu0
      %v543 = vadd.f32 %v282, %v542
      %v544 = vpop.f32.mrb[0].mxu0
      %v545 = vpop.f32.mrb[0].mxu0
      %v546 = vadd.f32 %v282, %v545
      %v547 = vpop.f32.mrb[0].mxu0
      %548 = vmatprep.mubr.bf16.mxu0 0
      %549 = vmatmul.mubr.bf16.gmra.mrb[0].mxu0 %v359
      %v550 = vpop.f32.mrb[0].mxu0
      %v551 = vadd.f32 %v282, %v550
      %v552 = vpop.f32.mrb[0].mxu0
      %v553 = vpop.f32.mrb[0].mxu0
      %v554 = vadd.f32 %v282, %v553
      %v555 = vpop.f32.mrb[0].mxu0
      %556 = vmatprep.mubr.bf16.mxu0 0
      %557 = vmatmul.mubr.bf16.gmra.mrb[0].mxu0 %v360
      %v558 = vpop.f32.mrb[0].mxu0
      %v559 = vadd.f32 %v282, %v558
      %v560 = vpop.f32.mrb[0].mxu0
      %v561 = vpop.f32.mrb[0].mxu0
      %v562 = vadd.f32 %v282, %v561
      %v563 = vpop.f32.mrb[0].mxu0
      %564 = vmatprep.mubr.bf16.mxu0 0
      %565 = vmatmul.mubr.bf16.gmra.mrb[0].mxu0 %v361
      %v566 = vpop.f32.mrb[0].mxu0
      %v567 = vadd.f32 %v282, %v566
      %v568 = vpop.f32.mrb[0].mxu0
      %v569 = vpop.f32.mrb[0].mxu0
      %v570 = vadd.f32 %v282, %v569
      %v571 = vpop.f32.mrb[0].mxu0
      %572 = vmatprep.mubr.bf16.mxu0 0
      %573 = vmatmul.mubr.bf16.gmra.mrb[0].mxu0 %v362
      %v574 = vpop.f32.mrb[0].mxu0
      %v575 = vadd.f32 %v282, %v574
      %v576 = vpop.f32.mrb[0].mxu0
      %v577 = vpop.f32.mrb[0].mxu0
      %v578 = vadd.f32 %v282, %v577
      %v579 = vpop.f32.mrb[0].mxu0
      %580 = vmatprep.mubr.bf16.mxu0 0
      %581 = vmatmul.mubr.bf16.gmra.mrb[0].mxu0 %v363
      %v582 = vpop.f32.mrb[0].mxu0
      %v583 = vadd.f32 %v282, %v582
      %v584 = vpop.f32.mrb[0].mxu0
      %v585 = vpop.f32.mrb[0].mxu0
      %v586 = vadd.f32 %v282, %v585
      %v587 = vpop.f32.mrb[0].mxu0
      %588 = vdwg.mxu0
      %v589 = vmax.f32 %v463, 0.0
      %v590 = vmax.f32 %v466, 0.0
      %v591 = vmax.f32 %v471, 0.0
      %v592 = vmax.f32 %v474, 0.0
      %v593 = vmax.f32 %v479, 0.0
      %v594 = vmax.f32 %v482, 0.0
      %v595 = vmax.f32 %v487, 0.0
      %v596 = vmax.f32 %v490, 0.0
      %v597 = vmax.f32 %v495, 0.0
      %v598 = vmax.f32 %v498, 0.0
      %v599 = vmax.f32 %v503, 0.0
      %v600 = vmax.f32 %v506, 0.0
      %v601 = vmax.f32 %v511, 0.0
      %v602 = vmax.f32 %v514, 0.0
      %v603 = vmax.f32 %v519, 0.0
      %v604 = vmax.f32 %v522, 0.0
      %v605 = vmax.f32 %v527, 0.0
      %v606 = vmax.f32 %v530, 0.0
      %v607 = vmax.f32 %v535, 0.0
      %v608 = vmax.f32 %v538, 0.0
      %v609 = vmax.f32 %v543, 0.0
      %v610 = vmax.f32 %v546, 0.0
      %v611 = vmax.f32 %v551, 0.0
      %v612 = vmax.f32 %v554, 0.0
      %v613 = vmax.f32 %v559, 0.0
      %v614 = vmax.f32 %v562, 0.0
      %v615 = vmax.f32 %v567, 0.0
      %v616 = vmax.f32 %v570, 0.0
      %v617 = vmax.f32 %v575, 0.0
      %v618 = vmax.f32 %v578, 0.0
      %v619 = vmax.f32 %v583, 0.0
      %v620 = vmax.f32 %v586, 0.0
      %v621 = vpack.c.bf16 %v590, %v589
      %v622 = vpack.c.bf16 %v592, %v591
      %v623 = vpack.c.bf16 %v594, %v593
      %v624 = vpack.c.bf16 %v596, %v595
      %v625 = vpack.c.bf16 %v598, %v597
      %v626 = vpack.c.bf16 %v600, %v599
      %v627 = vpack.c.bf16 %v602, %v601
      %v628 = vpack.c.bf16 %v604, %v603
      %v629 = vpack.c.bf16 %v606, %v605
      %v630 = vpack.c.bf16 %v608, %v607
      %v631 = vpack.c.bf16 %v610, %v609
      %v632 = vpack.c.bf16 %v612, %v611
      %v633 = vpack.c.bf16 %v614, %v613
      %v634 = vpack.c.bf16 %v616, %v615
      %v635 = vpack.c.bf16 %v618, %v617
      %v636 = vpack.c.bf16 %v620, %v619
      %v637 = vld [vmem:[%s3] sm:$0xf]
      %v638 = vld [vmem:[%s3 + $0x4] sm:$0xf]
      %v639 = vld [vmem:[%s3 + $0x8] sm:$0xf]
      %v640 = vld [vmem:[%s3 + $0xc] sm:$0xf]
      %v641 = vld [vmem:[%s3 + $0x10] sm:$0xf]
      %v642 = vld [vmem:[%s3 + $0x14] sm:$0xf]
      %v643 = vld [vmem:[%s3 + $0x18] sm:$0xf]
      %v644 = vld [vmem:[%s3 + $0x1c] sm:$0xf]
      %v645 = vld [vmem:[%s3 + $0x20] sm:$0xf]
      %v646 = vld [vmem:[%s3 + $0x24] sm:$0xf]
      %v647 = vld [vmem:[%s3 + $0x28] sm:$0xf]
      %v648 = vld [vmem:[%s3 + $0x2c] sm:$0xf]
      %v649 = vld [vmem:[%s3 + $0x30] sm:$0xf]
      %v650 = vld [vmem:[%s3 + $0x34] sm:$0xf]
      %v651 = vld [vmem:[%s3 + $0x38] sm:$0xf]
      %v652 = vld [vmem:[%s3 + $0x3c] sm:$0xf]
      %v653 = vld [vmem:[%s4] sm:$0x1]
      %v655 = vlaneseq
      %v656 = vshrl.u32 %v655, 7
      %v657 = vsub.s32 0, %v656
      %v658 = vrot.slane %v653, %v657
      %v676 = vunpack.c.l.b16 %v637
      %v677 = vunpack.c.l.b16 %v638
      %v678 = vunpack.c.l.b16 %v639
      %v679 = vunpack.c.l.b16 %v640
      %v680 = vunpack.c.l.b16 %v641
      %v681 = vunpack.c.l.b16 %v642
      %v682 = vunpack.c.l.b16 %v643
      %v683 = vunpack.c.l.b16 %v644
      %v684 = vunpack.c.l.b16 %v645
      %v685 = vunpack.c.l.b16 %v646
      %v686 = vunpack.c.l.b16 %v647
      %v687 = vunpack.c.l.b16 %v648
      %v688 = vunpack.c.l.b16 %v649
      %v689 = vunpack.c.l.b16 %v650
      %v690 = vunpack.c.l.b16 %v651
      %v691 = vunpack.c.l.b16 %v652
      %v692 = vpack.c.b16 %v677, %v676
      %v693 = vpack.c.b16 %v679, %v678
      %v694 = vpack.c.b16 %v681, %v680
      %v695 = vpack.c.b16 %v683, %v682
      %v696 = vpack.c.b16 %v685, %v684
      %v697 = vpack.c.b16 %v687, %v686
      %v698 = vpack.c.b16 %v689, %v688
      %v699 = vpack.c.b16 %v691, %v690
      %708 = vmatprep.subr.bf16.mxu0 0
      %709 = vmatpush1.bf16.msra.mxu0 %v692
      %710 = vmatprep.subr.bf16.mxu0 0
      %711 = vmatpush1.bf16.msra.mxu0 %v693
      %712 = vmatprep.subr.bf16.mxu0 0
      %713 = vmatpush1.bf16.msra.mxu0 %v694
      %714 = vmatprep.subr.bf16.mxu0 0
      %715 = vmatpush1.bf16.msra.mxu0 %v695
      %716 = vmatprep.subr.bf16.mxu0 0
      %717 = vmatpush1.bf16.msra.mxu0 %v696
      %718 = vmatprep.subr.bf16.mxu0 0
      %719 = vmatpush1.bf16.msra.mxu0 %v697
      %720 = vmatprep.subr.bf16.mxu0 0
      %721 = vmatpush1.bf16.msra.mxu0 %v698
      %722 = vmatprep.subr.bf16.mxu0 0
      %723 = vmatpush1.bf16.msra.mxu0 %v699
      %724 = vmatprep.subr.bf16.mxu0 0
      %725 = vmatpush1.bf16.msra.mxu0 0
      %726 = vmatprep.subr.bf16.mxu0 0
      %727 = vmatpush1.bf16.msra.mxu0 0
      %728 = vmatprep.subr.bf16.mxu0 0
      %729 = vmatpush1.bf16.msra.mxu0 0
      %730 = vmatprep.subr.bf16.mxu0 0
      %731 = vmatpush1.bf16.msra.mxu0 0
      %732 = vmatprep.subr.bf16.mxu0 0
      %733 = vmatpush1.bf16.msra.mxu0 0
      %734 = vmatprep.subr.bf16.mxu0 0
      %735 = vmatpush1.bf16.msra.mxu0 0
      %736 = vmatprep.subr.bf16.mxu0 0
      %737 = vmatpush1.bf16.msra.mxu0 0
      %738 = vmatprep.subr.bf16.mxu0 0
      %739 = vmatpush1.bf16.msra.mxu0 0
      %740 = vmatprep.mubr.bf16.mxu0 0
      %741 = vmatmul.mubr.bf16.gmra.mrb[0].mxu0 %v621
      %v742 = vpop.f32.mrb[0].mxu0
      %v743 = vadd.f32 %v658, %v742
      %v744 = vpop.f32.mrb[0].mxu0
      %v745 = vpop.f32.mrb[0].mxu0
      %v746 = vadd.f32 %v658, %v745
      %v747 = vpop.f32.mrb[0].mxu0
      %748 = vmatprep.mubr.bf16.mxu0 0
      %749 = vmatmul.mubr.bf16.gmra.mrb[0].mxu0 %v622
      %v750 = vpop.f32.mrb[0].mxu0
      %v751 = vadd.f32 %v658, %v750
      %v752 = vpop.f32.mrb[0].mxu0
      %v753 = vpop.f32.mrb[0].mxu0
      %v754 = vadd.f32 %v658, %v753
      %v755 = vpop.f32.mrb[0].mxu0
      %756 = vmatprep.mubr.bf16.mxu0 0
      %757 = vmatmul.mubr.bf16.gmra.mrb[0].mxu0 %v623
      %v758 = vpop.f32.mrb[0].mxu0
      %v759 = vadd.f32 %v658, %v758
      %v760 = vpop.f32.mrb[0].mxu0
      %v761 = vpop.f32.mrb[0].mxu0
      %v762 = vadd.f32 %v658, %v761
      %v763 = vpop.f32.mrb[0].mxu0
      %764 = vmatprep.mubr.bf16.mxu0 0
      %765 = vmatmul.mubr.bf16.gmra.mrb[0].mxu0 %v624
      %v766 = vpop.f32.mrb[0].mxu0
      %v767 = vadd.f32 %v658, %v766
      %v768 = vpop.f32.mrb[0].mxu0
      %v769 = vpop.f32.mrb[0].mxu0
      %v770 = vadd.f32 %v658, %v769
      %v771 = vpop.f32.mrb[0].mxu0
      %772 = vmatprep.mubr.bf16.mxu0 0
      %773 = vmatmul.mubr.bf16.gmra.mrb[0].mxu0 %v625
      %v774 = vpop.f32.mrb[0].mxu0
      %v775 = vadd.f32 %v658, %v774
      %v776 = vpop.f32.mrb[0].mxu0
      %v777 = vpop.f32.mrb[0].mxu0
      %v778 = vadd.f32 %v658, %v777
      %v779 = vpop.f32.mrb[0].mxu0
      %780 = vmatprep.mubr.bf16.mxu0 0
      %781 = vmatmul.mubr.bf16.gmra.mrb[0].mxu0 %v626
      %v782 = vpop.f32.mrb[0].mxu0
      %v783 = vadd.f32 %v658, %v782
      %v784 = vpop.f32.mrb[0].mxu0
      %v785 = vpop.f32.mrb[0].mxu0
      %v786 = vadd.f32 %v658, %v785
      %v787 = vpop.f32.mrb[0].mxu0
      %788 = vmatprep.mubr.bf16.mxu0 0
      %789 = vmatmul.mubr.bf16.gmra.mrb[0].mxu0 %v627
      %v790 = vpop.f32.mrb[0].mxu0
      %v791 = vadd.f32 %v658, %v790
      %v792 = vpop.f32.mrb[0].mxu0
      %v793 = vpop.f32.mrb[0].mxu0
      %v794 = vadd.f32 %v658, %v793
      %v795 = vpop.f32.mrb[0].mxu0
      %796 = vmatprep.mubr.bf16.mxu0 0
      %797 = vmatmul.mubr.bf16.gmra.mrb[0].mxu0 %v628
      %v798 = vpop.f32.mrb[0].mxu0
      %v799 = vadd.f32 %v658, %v798
      %v800 = vpop.f32.mrb[0].mxu0
      %v801 = vpop.f32.mrb[0].mxu0
      %v802 = vadd.f32 %v658, %v801
      %v803 = vpop.f32.mrb[0].mxu0
      %804 = vmatprep.mubr.bf16.mxu0 0
      %805 = vmatmul.mubr.bf16.gmra.mrb[0].mxu0 %v629
      %v806 = vpop.f32.mrb[0].mxu0
      %v807 = vadd.f32 %v658, %v806
      %v808 = vpop.f32.mrb[0].mxu0
      %v809 = vpop.f32.mrb[0].mxu0
      %v810 = vadd.f32 %v658, %v809
      %v811 = vpop.f32.mrb[0].mxu0
      %812 = vmatprep.mubr.bf16.mxu0 0
      %813 = vmatmul.mubr.bf16.gmra.mrb[0].mxu0 %v630
      %v814 = vpop.f32.mrb[0].mxu0
      %v815 = vadd.f32 %v658, %v814
      %v816 = vpop.f32.mrb[0].mxu0
      %v817 = vpop.f32.mrb[0].mxu0
      %v818 = vadd.f32 %v658, %v817
      %v819 = vpop.f32.mrb[0].mxu0
      %820 = vmatprep.mubr.bf16.mxu0 0
      %821 = vmatmul.mubr.bf16.gmra.mrb[0].mxu0 %v631
      %v822 = vpop.f32.mrb[0].mxu0
      %v823 = vadd.f32 %v658, %v822
      %v824 = vpop.f32.mrb[0].mxu0
      %v825 = vpop.f32.mrb[0].mxu0
      %v826 = vadd.f32 %v658, %v825
      %v827 = vpop.f32.mrb[0].mxu0
      %828 = vmatprep.mubr.bf16.mxu0 0
      %829 = vmatmul.mubr.bf16.gmra.mrb[0].mxu0 %v632
      %v830 = vpop.f32.mrb[0].mxu0
      %v831 = vadd.f32 %v658, %v830
      %v832 = vpop.f32.mrb[0].mxu0
      %v833 = vpop.f32.mrb[0].mxu0
      %v834 = vadd.f32 %v658, %v833
      %v835 = vpop.f32.mrb[0].mxu0
      %836 = vmatprep.mubr.bf16.mxu0 0
      %837 = vmatmul.mubr.bf16.gmra.mrb[0].mxu0 %v633
      %v838 = vpop.f32.mrb[0].mxu0
      %v839 = vadd.f32 %v658, %v838
      %v840 = vpop.f32.mrb[0].mxu0
      %v841 = vpop.f32.mrb[0].mxu0
      %v842 = vadd.f32 %v658, %v841
      %v843 = vpop.f32.mrb[0].mxu0
      %844 = vmatprep.mubr.bf16.mxu0 0
      %845 = vmatmul.mubr.bf16.gmra.mrb[0].mxu0 %v634
      %v846 = vpop.f32.mrb[0].mxu0
      %v847 = vadd.f32 %v658, %v846
      %v848 = vpop.f32.mrb[0].mxu0
      %v849 = vpop.f32.mrb[0].mxu0
      %v850 = vadd.f32 %v658, %v849
      %v851 = vpop.f32.mrb[0].mxu0
      %852 = vmatprep.mubr.bf16.mxu0 0
      %853 = vmatmul.mubr.bf16.gmra.mrb[0].mxu0 %v635
      %v854 = vpop.f32.mrb[0].mxu0
      %v855 = vadd.f32 %v658, %v854
      %v856 = vpop.f32.mrb[0].mxu0
      %v857 = vpop.f32.mrb[0].mxu0
      %v858 = vadd.f32 %v658, %v857
      %v859 = vpop.f32.mrb[0].mxu0
      %860 = vmatprep.mubr.bf16.mxu0 0
      %861 = vmatmul.mubr.bf16.gmra.mrb[0].mxu0 %v636
      %v862 = vpop.f32.mrb[0].mxu0
      %v863 = vadd.f32 %v658, %v862
      %v864 = vpop.f32.mrb[0].mxu0
      %v865 = vpop.f32.mrb[0].mxu0
      %v866 = vadd.f32 %v658, %v865
      %v867 = vpop.f32.mrb[0].mxu0
      %868 = vdwg.mxu0
      %869 = vst [vmem:[%s226] sm:$0xff] %v743
      %870 = vst [vmem:[%s226 + $0x8] sm:$0xff] %v746
      %871 = vst [vmem:[%s226 + $0x10] sm:$0xff] %v751
      %872 = vst [vmem:[%s226 + $0x18] sm:$0xff] %v754
      %873 = vst [vmem:[%s226 + $0x20] sm:$0xff] %v759
      %874 = vst [vmem:[%s226 + $0x28] sm:$0xff] %v762
      %875 = vst [vmem:[%s226 + $0x30] sm:$0xff] %v767
      %876 = vst [vmem:[%s226 + $0x38] sm:$0xff] %v770
      %877 = vst [vmem:[%s226 + $0x40] sm:$0xff] %v775
      %878 = vst [vmem:[%s226 + $0x48] sm:$0xff] %v778
      %879 = vst [vmem:[%s226 + $0x50] sm:$0xff] %v783
      %880 = vst [vmem:[%s226 + $0x58] sm:$0xff] %v786
      %881 = vst [vmem:[%s226 + $0x60] sm:$0xff] %v791
      %882 = vst [vmem:[%s226 + $0x68] sm:$0xff] %v794
      %883 = vst [vmem:[%s226 + $0x70] sm:$0xff] %v799
      %884 = vst [vmem:[%s226 + $0x78] sm:$0xff] %v802
      %885 = vst [vmem:[%s226 + $0x80] sm:$0xff] %v807
      %886 = vst [vmem:[%s226 + $0x88] sm:$0xff] %v810
      %887 = vst [vmem:[%s226 + $0x90] sm:$0xff] %v815
      %888 = vst [vmem:[%s226 + $0x98] sm:$0xff] %v818
      %889 = vst [vmem:[%s226 + $0xa0] sm:$0xff] %v823
      %890 = vst [vmem:[%s226 + $0xa8] sm:$0xff] %v826
      %891 = vst [vmem:[%s226 + $0xb0] sm:$0xff] %v831
      %892 = vst [vmem:[%s226 + $0xb8] sm:$0xff] %v834
      %893 = vst [vmem:[%s226 + $0xc0] sm:$0xff] %v839
      %894 = vst [vmem:[%s226 + $0xc8] sm:$0xff] %v842
      %895 = vst [vmem:[%s226 + $0xd0] sm:$0xff] %v847
      %896 = vst [vmem:[%s226 + $0xd8] sm:$0xff] %v850
      %897 = vst [vmem:[%s226 + $0xe0] sm:$0xff] %v855
      %898 = vst [vmem:[%s226 + $0xe8] sm:$0xff] %v858
      %899 = vst [vmem:[%s226 + $0xf0] sm:$0xff] %v863
      %900 = vst [vmem:[%s226 + $0xf8] sm:$0xff] %v866
      %s901 = smul.u32 32, %s16
      %p902 = scmp.lt.s32.totalorder %s901, 63
      %s903 = scalar_select %p902, %s901, 63
      %s904 = smul.addr %s903, 8
      %s905 = scalar_lea.vmem %s5, %s904
      // Predicated region
      $region41: #{pgn_forward.1} parent=39 // pred_check
        %p906 = pneg %p144
      $region42: #{pgn_forward.1} parent=39 // pred_check_branch
        %908 = sbr.rel (%p906) target = $region44
      $region43: #{pgn_forward.1} parent=39 // pred_region
        %s909 = smul.u32 32, %s16
      $region44: #{pgn_forward.1} parent=39 // pred_fallthru
        _
    $region40: #{pgn_forward.1} parent=5 // pred_fallthru
      _
    %p910 = scmp.le.s32.totalorder 2, %s11
    // Predicated region
    $region45: #{pgn_forward.1} parent=5 // pred_check
      %p911 = pneg %p910
    $region46: #{pgn_forward.1} parent=5 // pred_check_branch
      %913 = sbr.rel (%p911) target = $region48
    $region47: #{pgn_forward.1} parent=5 // pred_region
      %s914 = ssub.s32 %s11, 2
      // Predicated region
      $region49: #{pgn_forward.1} parent=47 // pred_check
        %p915 = pneg %p150
      $region50: #{pgn_forward.1} parent=47 // pred_check_branch
        %917 = sbr.rel (%p915) target = $region52
      $region51: #{pgn_forward.1} parent=47 // pred_region
        %s918 = smul.u32 32, %s17
        %p919 = scmp.lt.s32.totalorder %s918, 63
        %s920 = scalar_select %p919, %s918, 63
        %s921 = smul.addr %s920, 8
        %s922 = scalar_lea.vmem %s5, %s921
      $region52: #{pgn_forward.1} parent=47 // pred_fallthru
        _
    $region48: #{pgn_forward.1} parent=5 // pred_fallthru
      _
  $region6: #{pgn_forward.1} parent=0 // loop_footer
    %s15 = sadd.s32 1, %s11
  $region7: #{pgn_forward.1} parent=0 // loop_footer_branch
    %10 = sbr.rel target = $region3
  $region8: #{pgn_forward.1} parent=0 // loop_exit
    _

</llo_original>
